<compile_context>
chip_gen: v6e
topology: v6e:2x2x1
jax: 0.10.0
libtpu: 0.0.40
codegen_flags: <defaults>
</compile_context>

<pallas_src>
import jax
import jax.numpy as jnp
from jax import lax
from jax.experimental import pallas as pl
from jax.experimental.pallas import tpu as pltpu

TEMPERATURE = 0.1
COS_EPS = 1e-8          # torch.nn.CosineSimilarity default eps
_NEG_INF = -1e30        # finite sentinel; exp(-1e30 - m) underflows to 0

LANE = 128
TM_CAP = 256            # row-block cap (sized for v7x's 64 MiB VMEM as well)
TN_CAP = 512            # column-block cap


def _pick_tile(n, cap):
    """Largest divisor of n that is <= cap and a multiple of 8 (fallback: n)."""
    if n <= cap:
        return n
    best = None
    t = 8
    while t <= cap:
        if n % t == 0:
            best = t
        t += 8
    return best if best is not None else n


def _nt_xent_row_loss_kernel(q_ref, k_ref, pos_ref, out_ref, m_sc, l_sc):
    """Per-row-block loss: out[r] = logsumexp_{j != r} sim[r, j] - pos[r]."""
    i = pl.program_id(0)          # row-block index ("parallel")
    j = pl.program_id(1)          # column-block index ("arbitrary" reduction)
    tm = q_ref.shape[0]
    tn = k_ref.shape[0]

    @pl.when(j == 0)
    def _():
        m_sc[...] = jnp.full(m_sc.shape, _NEG_INF, jnp.float32)
        l_sc[...] = jnp.zeros(l_sc.shape, jnp.float32)

    # (tm, tn) tile of the temperature-scaled cosine-similarity matrix.
    # bf16 operands, f32 accumulation; contract on the lane dim of both
    # operands so no transpose is materialized.
    s = lax.dot_general(
        q_ref[...], k_ref[...],
        dimension_numbers=(((1,), (1,)), ((), ())),
        preferred_element_type=jnp.float32)

    # Tile-local diagonal mask (self-similarity is excluded from the logits).
    row_g = i * tm + lax.broadcasted_iota(jnp.int32, (tm, tn), 0)
    col_g = j * tn + lax.broadcasted_iota(jnp.int32, (tm, tn), 1)
    s = jnp.where(row_g == col_g, _NEG_INF, s)

    # Online (flash-style) logsumexp across column blocks.
    m_prev = m_sc[...]
    m_new = jnp.maximum(m_prev, jnp.max(s, axis=-1, keepdims=True))
    alpha = jnp.exp(m_prev - m_new)
    l_sc[...] = alpha * l_sc[...] + jnp.sum(jnp.exp(s - m_new),
                                            axis=-1, keepdims=True)
    m_sc[...] = m_new

    @pl.when(j == pl.num_programs(1) - 1)
    def _():
        lse = m_sc[...] + jnp.log(l_sc[...])
        out_ref[...] = lse - pos_ref[...]


def nt_xent_loss(z_i, z_j, temperature=TEMPERATURE):
    """NT-Xent forward (world_size == 1). z_i, z_j: (B, D)."""
    z = jnp.concatenate([z_i, z_j], axis=0).astype(jnp.float32)   # (N, D)
    N, D = z.shape
    bw = N // 2

    # ---- O(N*D) prep in plain XLA (hoisted out of the O(N^2) kernel) ----
    # Pre-normalize rows and fold the temperature into the operands:
    #   z_hat = z / max(||z||, sqrt(eps)) / sqrt(T)  =>  z_hat @ z_hat.T = cos/T
    # (clamping the norm instead of the norm-product only differs for
    #  near-zero-norm rows vs. torch's eps semantics)
    norm = jnp.sqrt(jnp.sum(z * z, axis=-1, keepdims=True))
    z_hat = (z * (1.0 / jnp.maximum(norm, jnp.sqrt(COS_EPS)))
             * (1.0 / jnp.sqrt(temperature)))

    # Zero-pad the feature dim to a lane multiple (changes neither dots nor norms).
    d_pad = max(LANE, ((D + LANE - 1) // LANE) * LANE)
    if d_pad != D:
        z_hat = jnp.pad(z_hat, ((0, 0), (0, d_pad - D)))

    # bf16 operands for the MXU; accumulation stays f32 in the kernel.
    zb = z_hat.astype(jnp.bfloat16)

    # Positive-pair term pos[i] = sim[i, (i + bw) % N]: an (N, D) row dot on the
    # same bf16-rounded operands the kernel feeds the MXU.
    zb32 = zb.astype(jnp.float32)
    pos = jnp.sum(zb32 * jnp.roll(zb32, shift=-bw, axis=0),
                  axis=-1, keepdims=True)                          # (N, 1) f32

    tm = _pick_tile(N, TM_CAP)
    tn = _pick_tile(N, TN_CAP)
    grid = (N // tm, N // tn)

    row_losses = pl.pallas_call(
        _nt_xent_row_loss_kernel,
        out_shape=jax.ShapeDtypeStruct((N, 1), jnp.float32),
        grid_spec=pltpu.PrefetchScalarGridSpec(
            num_scalar_prefetch=0,
            grid=grid,
            in_specs=[
                pl.BlockSpec((tm, d_pad), lambda i, j: (i, 0)),   # row block of z_hat
                pl.BlockSpec((tn, d_pad), lambda i, j: (j, 0)),   # column block of z_hat
                pl.BlockSpec((tm, 1), lambda i, j: (i, 0)),       # positives for row block
            ],
            out_specs=pl.BlockSpec((tm, 1), lambda i, j: (i, 0)),
            scratch_shapes=[
                pltpu.VMEM((tm, 1), jnp.float32),   # running row max m_i
                pltpu.VMEM((tm, 1), jnp.float32),   # running row sum l_i
            ],
        ),
        compiler_params=pltpu.CompilerParams(
            dimension_semantics=("parallel", "arbitrary"),
            vmem_limit_bytes=32 * 1024 * 1024,
        ),
    )(zb, zb, pos)

    return jnp.sum(row_losses) / jnp.float32(N)


# ---------------------------- references ------------------------------------

def _reference_loss_f32(z_i, z_j, temperature=TEMPERATURE):
    """Pure-f32 reference mirroring the torch module (world_size == 1)."""
    z = jnp.concatenate([z_i, z_j], axis=0).astype(jnp.float32)
    N = z.shape[0]
    bw = N // 2
    norm = jnp.sqrt(jnp.sum(z * z, axis=-1, keepdims=True))
    sim = (z @ z.T) / jnp.maximum(norm * norm.T, COS_EPS) / temperature
    idx = jnp.arange(N)
    sim_masked = jnp.where(idx[:, None] == idx[None, :], -jnp.inf, sim)
    lse = jax.scipy.special.logsumexp(sim_masked, axis=-1)
    pos = sim[idx, (idx + bw) % N]
    return jnp.sum(lse - pos) / N


def _reference_loss_bf16_mechanics(z_i, z_j, temperature=TEMPERATURE):
    """Reference mirroring the kernel's numerics (bf16 operands, f32 accum)."""
    z = jnp.concatenate([z_i, z_j], axis=0).astype(jnp.float32)
    N = z.shape[0]
    bw = N // 2
    norm = jnp.sqrt(jnp.sum(z * z, axis=-1, keepdims=True))
    z_hat = (z * (1.0 / jnp.maximum(norm, jnp.sqrt(COS_EPS)))
             * (1.0 / jnp.sqrt(temperature)))
    zb = z_hat.astype(jnp.bfloat16).astype(jnp.float32)
    sim = zb @ zb.T
    idx = jnp.arange(N)
    sim_masked = jnp.where(idx[:, None] == idx[None, :], -jnp.inf, sim)
    lse = jax.scipy.special.logsumexp(sim_masked, axis=-1)
    pos = jnp.sum(zb * jnp.roll(zb, shift=-bw, axis=0), axis=-1)
    return jnp.sum(lse - pos) / N


if __name__ == "__main__":
    # Small demo shape: batch_size=4, world_size=1, feature dim=32 -> N=8.
    B, D = 4, 32
    key = jax.random.PRNGKey(0)
    k1, k2 = jax.random.split(key)
    z_i = jax.random.normal(k1, (B, D), dtype=jnp.float32)
    z_j = jax.random.normal(k2, (B, D), dtype=jnp.float32)

    loss = jax.block_until_ready(nt_xent_loss(z_i, z_j))
    ref_tight = jax.block_until_ready(_reference_loss_bf16_mechanics(z_i, z_j))
    ref_f32 = jax.block_until_ready(_reference_loss_f32(z_i, z_j))
    assert jnp.allclose(loss, ref_tight, rtol=1e-4, atol=1e-4), (loss, ref_tight)
    assert jnp.allclose(loss, ref_f32, rtol=5e-2, atol=5e-2), (loss, ref_f32)

    # Second check exercising a multi-tile grid (several row & column blocks).
    B2, D2 = 320, 64   # N=640 -> tm=160, tn=320 -> grid (4, 2)
    k3, k4 = jax.random.split(k2)
    z_i2 = jax.random.normal(k3, (B2, D2), dtype=jnp.float32)
    z_j2 = jax.random.normal(k4, (B2, D2), dtype=jnp.float32)
    loss2 = jax.block_until_ready(nt_xent_loss(z_i2, z_j2))
    ref2 = jax.block_until_ready(_reference_loss_bf16_mechanics(z_i2, z_j2))
    assert jnp.allclose(loss2, ref2, rtol=1e-4, atol=1e-4), (loss2, ref2)

    print("KERNEL_OK")
</pallas_src>

<mosaic_0001>
module attributes {stable_mosaic.version = 11 : i64} {
  func.func @_nt_xent_row_loss_kernel(%arg0: i32, %arg1: i32, %arg2: memref<8x128xbf16, #tpu.memory_space<vmem>>, %arg3: memref<8x128xbf16, #tpu.memory_space<vmem>>, %arg4: memref<8x1xf32, #tpu.memory_space<vmem>>, %arg5: memref<8x1xf32, #tpu.memory_space<vmem>>, %arg6: memref<8x1xf32, #tpu.memory_space<vmem>>, %arg7: memref<8x1xf32, #tpu.memory_space<vmem>>) attributes {dimension_semantics = [#tpu.dimension_semantics<parallel>, #tpu.dimension_semantics<arbitrary>], iteration_bounds = array<i64: 1, 1>, scalar_prefetch = 0 : i64, scratch_operands = 2 : i64, tpu.core_type = #tpu.core_type<tc>, window_params = [{transform_indices = @transform_0, window_bounds = array<i64: 8, 128>}, {transform_indices = @transform_1, window_bounds = array<i64: 8, 128>}, {transform_indices = @transform_2, window_bounds = array<i64: 8, 1>}, {transform_indices = @transform_3, window_bounds = array<i64: 8, 1>}]} {
    %c0_i32 = arith.constant 0 : i32
    %0 = arith.cmpi eq, %arg1, %c0_i32 : i32
    %1 = arith.extui %0 : i1 to i32
    %c0_i32_0 = arith.constant 0 : i32
    %2 = arith.cmpi ne, %1, %c0_i32_0 : i32
    scf.if %2 {
      %cst_18 = arith.constant -1.000000e+30 : f32
      %36 = vector.broadcast %cst_18 : f32 to vector<8x1xf32>
      %c0_19 = arith.constant 0 : index
      %c0_20 = arith.constant 0 : index
      %37 = vector.load %arg6[%c0_19, %c0_20] : memref<8x1xf32, #tpu.memory_space<vmem>>, vector<8x1xf32>
      tpu.vector_store %arg6[%c0_19, %c0_20], %36 {strides = array<i32>} : memref<8x1xf32, #tpu.memory_space<vmem>>, vector<8x1xf32>,
      %cst_21 = arith.constant 0.000000e+00 : f32
      %38 = vector.broadcast %cst_21 : f32 to vector<8x1xf32>
      %c0_22 = arith.constant 0 : index
      %c0_23 = arith.constant 0 : index
      %39 = vector.load %arg7[%c0_22, %c0_23] : memref<8x1xf32, #tpu.memory_space<vmem>>, vector<8x1xf32>
      tpu.vector_store %arg7[%c0_22, %c0_23], %38 {strides = array<i32>} : memref<8x1xf32, #tpu.memory_space<vmem>>, vector<8x1xf32>,
    } else {
    }
    %c0 = arith.constant 0 : index
    %c0_1 = arith.constant 0 : index
    %3 = vector.load %arg2[%c0, %c0_1] : memref<8x128xbf16, #tpu.memory_space<vmem>>, vector<8x128xbf16>
    %c0_2 = arith.constant 0 : index
    %c0_3 = arith.constant 0 : index
    %4 = vector.load %arg3[%c0_2, %c0_3] : memref<8x128xbf16, #tpu.memory_space<vmem>>, vector<8x128xbf16>
    %cst = arith.constant dense<0.000000e+00> : vector<8x8xf32>
    %5 = tpu.matmul %3, %4, %cst {dimension_numbers = #tpu.dot_dimension_numbers<[1], [1], [0], [0], [0, 0, 1, 0], [], []>} : vector<8x128xbf16>, vector<8x128xbf16>, vector<8x8xf32> -> vector<8x8xf32>
    %c8_i32 = arith.constant 8 : i32
    %6 = arith.muli %arg0, %c8_i32 : i32
    %7 = tpu.iota {dimensions = array<i32: 0>} : vector<8x8xi32>
    %8 = vector.broadcast %6 : i32 to vector<8x8xi32>
    %9 = arith.addi %8, %7 : vector<8x8xi32>
    %c8_i32_4 = arith.constant 8 : i32
    %10 = arith.muli %arg1, %c8_i32_4 : i32
    %11 = tpu.iota {dimensions = array<i32: 1>} : vector<8x8xi32>
    %12 = vector.broadcast %10 : i32 to vector<8x8xi32>
    %13 = arith.addi %12, %11 : vector<8x8xi32>
    %14 = arith.cmpi eq, %9, %13 : vector<8x8xi32>
    %cst_5 = arith.constant -1.000000e+30 : f32
    %15 = vector.broadcast %cst_5 : f32 to vector<8x8xf32>
    %16 = arith.select %14, %15, %5 : vector<8x8xi1>, vector<8x8xf32>
    %c0_6 = arith.constant 0 : index
    %c0_7 = arith.constant 0 : index
    %17 = vector.load %arg6[%c0_6, %c0_7] : memref<8x1xf32, #tpu.memory_space<vmem>>, vector<8x1xf32>
    %cst_8 = arith.constant dense<0xFF800000> : vector<8xf32>
    %18 = vector.multi_reduction <maximumf>, %16, %cst_8 [1] : vector<8x8xf32> to vector<8xf32>
    %19 = vector.shape_cast %18 : vector<8xf32> to vector<8x1xf32>
    %20 = arith.maximumf %17, %19 : vector<8x1xf32>
    %21 = arith.subf %17, %20 : vector<8x1xf32>
    %22 = math.exp %21 : vector<8x1xf32>
    %c0_9 = arith.constant 0 : index
    %c0_10 = arith.constant 0 : index
    %23 = vector.load %arg7[%c0_9, %c0_10] : memref<8x1xf32, #tpu.memory_space<vmem>>, vector<8x1xf32>
    %24 = arith.mulf %22, %23 : vector<8x1xf32>
    %25 = vector.broadcast %20 : vector<8x1xf32> to vector<8x8xf32>
    %26 = arith.subf %16, %25 : vector<8x8xf32>
    %27 = math.exp %26 : vector<8x8xf32>
    %cst_11 = arith.constant dense<0.000000e+00> : vector<8xf32>
    %28 = vector.multi_reduction <add>, %27, %cst_11 [1] : vector<8x8xf32> to vector<8xf32>
    %29 = vector.shape_cast %28 : vector<8xf32> to vector<8x1xf32>
    %30 = arith.addf %24, %29 : vector<8x1xf32>
    %c0_12 = arith.constant 0 : index
    %c0_13 = arith.constant 0 : index
    %31 = vector.load %arg7[%c0_12, %c0_13] : memref<8x1xf32, #tpu.memory_space<vmem>>, vector<8x1xf32>
    tpu.vector_store %arg7[%c0_12, %c0_13], %30 {strides = array<i32>} : memref<8x1xf32, #tpu.memory_space<vmem>>, vector<8x1xf32>,
    %c0_14 = arith.constant 0 : index
    %c0_15 = arith.constant 0 : index
    %32 = vector.load %arg6[%c0_14, %c0_15] : memref<8x1xf32, #tpu.memory_space<vmem>>, vector<8x1xf32>
    tpu.vector_store %arg6[%c0_14, %c0_15], %20 {strides = array<i32>} : memref<8x1xf32, #tpu.memory_space<vmem>>, vector<8x1xf32>,
    %c0_i32_16 = arith.constant 0 : i32
    %33 = arith.cmpi eq, %arg1, %c0_i32_16 : i32
    %34 = arith.extui %33 : i1 to i32
    %c0_i32_17 = arith.constant 0 : i32
    %35 = arith.cmpi ne, %34, %c0_i32_17 : i32
    scf.if %35 {
      %c0_18 = arith.constant 0 : index
      %c0_19 = arith.constant 0 : index
      %36 = vector.load %arg6[%c0_18, %c0_19] : memref<8x1xf32, #tpu.memory_space<vmem>>, vector<8x1xf32>
      %c0_20 = arith.constant 0 : index
      %c0_21 = arith.constant 0 : index
      %37 = vector.load %arg7[%c0_20, %c0_21] : memref<8x1xf32, #tpu.memory_space<vmem>>, vector<8x1xf32>
      %38 = math.log %37 : vector<8x1xf32>
      %39 = arith.addf %36, %38 : vector<8x1xf32>
      %c0_22 = arith.constant 0 : index
      %c0_23 = arith.constant 0 : index
      %40 = vector.load %arg4[%c0_22, %c0_23] : memref<8x1xf32, #tpu.memory_space<vmem>>, vector<8x1xf32>
      %41 = arith.subf %39, %40 : vector<8x1xf32>
      %c0_24 = arith.constant 0 : index
      %c0_25 = arith.constant 0 : index
      %42 = vector.load %arg5[%c0_24, %c0_25] : memref<8x1xf32, #tpu.memory_space<vmem>>, vector<8x1xf32>
      tpu.vector_store %arg5[%c0_24, %c0_25], %41 {strides = array<i32>} : memref<8x1xf32, #tpu.memory_space<vmem>>, vector<8x1xf32>,
    } else {
    }
    return
  }
  func.func @transform_0(%arg0: i32, %arg1: i32) -> (i32, i32) {
    %c0_i32 = arith.constant 0 : i32
    %c0_i32_0 = arith.constant 0 : i32
    return %arg0, %c0_i32 : i32, i32
  }
  func.func @transform_1(%arg0: i32, %arg1: i32) -> (i32, i32) {
    %c0_i32 = arith.constant 0 : i32
    %c0_i32_0 = arith.constant 0 : i32
    return %arg1, %c0_i32 : i32, i32
  }
  func.func @transform_2(%arg0: i32, %arg1: i32) -> (i32, i32) {
    %c0_i32 = arith.constant 0 : i32
    %c0_i32_0 = arith.constant 0 : i32
    return %arg0, %c0_i32 : i32, i32
  }
  func.func @transform_3(%arg0: i32, %arg1: i32) -> (i32, i32) {
    %c0_i32 = arith.constant 0 : i32
    %c0_i32_0 = arith.constant 0 : i32
    return %arg0, %c0_i32 : i32, i32
  }
}

</mosaic_0001>

<llo_original>
// kernel: tpu_custom_call.1
$region0: #{tpu_custom_call.1}
  #allocation0 [shape = 'u32[]', space=smem, size = 0x4, offset = 0x4, fixed_abs, tag = 'smem constant byte address 0x4 - core index']
  #allocation1 [shape = 'u32[144,128]{1,0:T(1,128)}', space=vmem, size = 0x12000, scoped, tag = 'internal scratch']
  #allocation2 [shape = 'f32[8,1]{1,0:T(8,128)}', space=vmem, size = 0x1000, scoped, tag = 'scratch operand']
  #allocation3 [shape = 'f32[8,1]{1,0:T(8,128)}', space=vmem, size = 0x1000, scoped, tag = 'scratch operand']
  %s0 = inlined_call_operand.vmem [shape: bf16[8,128], index: 0, kind: input, shape index: {}]
  %s1 = inlined_call_operand.vmem [shape: bf16[8,128], index: 1, kind: input, shape index: {}]
  %s2 = inlined_call_operand.vmem [shape: f32[8,1], index: 2, kind: input, shape index: {}]
  %s3 = inlined_call_operand.vmem [shape: f32[8,1], index: 3, kind: output, shape index: {}]
  %s4 = sld [smem:[#allocation0]]
  $region30: #{tpu_custom_call.1} parent=0
    _
  %s6 = ssub.s32 1, %s4
  %s7 = scalar_select 0, %s6, %s4
  // Predicated region
  $region2: #{tpu_custom_call.1} parent=0 // pred_check
    _
  $region3: #{tpu_custom_call.1} parent=0 // pred_check_branch
    %9 = sbr.rel (0) target = $region5
  $region4: #{tpu_custom_call.1} parent=0 // pred_region
    _
  $region5: #{tpu_custom_call.1} parent=0 // pred_fallthru
    _
  // Predicated region
  $region6: #{tpu_custom_call.1} parent=0 // pred_check
    _
  $region7: #{tpu_custom_call.1} parent=0 // pred_check_branch
    %11 = sbr.rel (0) target = $region9
  $region8: #{tpu_custom_call.1} parent=0 // pred_region
    _
  $region9: #{tpu_custom_call.1} parent=0 // pred_fallthru
    _
  // Predicated region
  $region10: #{tpu_custom_call.1} parent=0 // pred_check
    _
  $region11: #{tpu_custom_call.1} parent=0 // pred_check_branch
    %13 = sbr.rel (0) target = $region13
  $region12: #{tpu_custom_call.1} parent=0 // pred_region
    _
  $region13: #{tpu_custom_call.1} parent=0 // pred_fallthru
    _
  %p15 = scmp.eq.s32.totalorder 0, 0
  // Predicated region
  $region14: #{tpu_custom_call.1} parent=0 // pred_check
    %p16 = pneg %p15
  $region15: #{tpu_custom_call.1} parent=0 // pred_check_branch
    %18 = sbr.rel (%p16) target = $region17
  $region16: #{tpu_custom_call.1} parent=0 // pred_region
    %vm19 = vcmask 7168
    %20 = vst.msk [vmem:[#allocation2] sm:$0xff] %vm19, -1e+30
    %21 = vst.msk [vmem:[#allocation3] sm:$0xff] %vm19, 0.0
  $region17: #{tpu_custom_call.1} parent=0 // pred_fallthru
    _
  %v22 = vld [vmem:[%s0] sm:$0xf]
  %v23 = vld [vmem:[%s1] sm:$0xf]
  %24 = vmatprep.subr.bf16.mxu0 0
  %25 = vmatpush1.bf16.xpose.msra.mxu0 0
  %26 = vmatprep.subr.bf16.mxu0 0
  %27 = vmatpush1.bf16.xpose.msra.mxu0 0
  %28 = vmatprep.subr.bf16.mxu0 0
  %29 = vmatpush1.bf16.xpose.msra.mxu0 0
  %30 = vmatprep.subr.bf16.mxu0 0
  %31 = vmatpush1.bf16.xpose.msra.mxu0 0
  %32 = vmatprep.subr.bf16.mxu0 0
  %33 = vmatpush1.bf16.xpose.msra.mxu0 0
  %34 = vmatprep.subr.bf16.mxu0 0
  %35 = vmatpush1.bf16.xpose.msra.mxu0 0
  %36 = vmatprep.subr.bf16.mxu0 0
  %37 = vmatpush1.bf16.xpose.msra.mxu0 0
  %38 = vmatprep.subr.bf16.mxu0 0
  %39 = vmatpush1.bf16.xpose.msra.mxu0 %v23
  %40 = vmatprep.subr.bf16.mxu0 0
  %41 = vmatpush2.bf16.xpose.msra.mxu0 0
  %42 = vmatprep.subr.bf16.mxu0 0
  %43 = vmatpush2.bf16.xpose.msra.mxu0 0
  %44 = vmatprep.subr.bf16.mxu0 0
  %45 = vmatpush2.bf16.xpose.msra.mxu0 0
  %46 = vmatprep.subr.bf16.mxu0 0
  %47 = vmatpush2.bf16.xpose.msra.mxu0 0
  %48 = vmatprep.subr.bf16.mxu0 0
  %49 = vmatpush2.bf16.xpose.msra.mxu0 0
  %50 = vmatprep.subr.bf16.mxu0 0
  %51 = vmatpush2.bf16.xpose.msra.mxu0 0
  %52 = vmatprep.subr.bf16.mxu0 0
  %53 = vmatpush2.bf16.xpose.msra.mxu0 0
  %54 = vmatprep.subr.bf16.mxu0 0
  %55 = vmatpush2.bf16.xpose.msra.mxu0 0
  %56 = vmatprep.mubr.bf16.mxu0 0
  %57 = vmatmul.mubr.bf16.gmra.mxu0 %v22
  %v58 = vpop.f32.mrf.mxu0
  %v59 = vadd.f32 0.0, %v58
  %v60 = vpop.f32.mrf.mxu0
  %v61 = vpop.f32.mrf.mxu0
  %v62 = vpop.f32.mrf.mxu0
  %63 = vdwg.mxu0
  %s64 = smul.u32 0, 8
  %v65 = vlaneseq
  %v66 = vshrl.u32 %v65, 7
  %v67 = vstv %s64
  %v68 = vadd.s32 %v67, %v66
  %s69 = smul.u32 0, 8
  %v70 = vlaneseq
  %v71 = vand.u32 %v70, 127
  %v72 = vstv %s69
  %v73 = vadd.s32 %v72, %v71
  %vm74 = vcmp.eq.s32.totalorder %v68, %v73
  %v75 = vsel %vm74, -1e+30, %v59
  %v76 = vld [vmem:[#allocation2] sm:$0xff]
  %vm77 = vcmask 64512
  %v78 = vsel %vm77, %v75, -inf
  %79 = vmax.xlane.f32.xlu0 %v78
  %v80 = vpop.xlane.xlu0 %79
  %v81 = vmax.f32 %v76, %v80
  %v82 = vsub.f32 %v76, %v81
  %v83 = vmul.f32 %v82, 1.442695
  %v84 = vpow.pop %v83
  %v85 = vld [vmem:[#allocation3] sm:$0xff]
  %v86 = vmul.f32 %v84, %v85
  %88 = vset.pattern.permute.xlu0 0
  %89 = vperm.xlu0 %88, %v81
  %v90 = vpop.permute.xlu0 %89
  %v92 = vsub.f32 %v75, %v90
  %v93 = vmul.f32 %v92, 1.442695
  %v94 = vpow.pop %v93
  %v95 = vsel %vm77, %v94, 0.0
  %96 = vadd.xlane.f32.xlu0 %v95
  %v97 = vpop.xlane.xlu0 %96
  %v98 = vadd.f32 %v86, %v97
  %vm99 = vcmask 7168
  %100 = vst.msk [vmem:[#allocation3] sm:$0xff] %vm99, %v98
  %101 = vst.msk [vmem:[#allocation2] sm:$0xff] %vm99, %v81
  // Predicated region
  $region18: #{tpu_custom_call.1} parent=0 // pred_check
    %p102 = pneg %p15
  $region19: #{tpu_custom_call.1} parent=0 // pred_check_branch
    %104 = sbr.rel (%p102) target = $region21
  $region20: #{tpu_custom_call.1} parent=0 // pred_region
    %v105 = vld [vmem:[#allocation2] sm:$0xff]
    %v106 = vld [vmem:[#allocation3] sm:$0xff]
    %v107 = vlog2.pop %v106
    %v108 = vmul.f32 %v107, 0.6931472
    %v109 = vadd.f32 %v105, %v108
    %v110 = vld [vmem:[%s2] sm:$0xff]
    %v111 = vsub.f32 %v109, %v110
    %112 = vst.msk [vmem:[%s3] sm:$0xff] %vm99, %v111
  $region21: #{tpu_custom_call.1} parent=0 // pred_fallthru
    _
  // Predicated region
  $region22: #{tpu_custom_call.1} parent=0 // pred_check
    _
  $region23: #{tpu_custom_call.1} parent=0 // pred_check_branch
    %114 = sbr.rel (0) target = $region25
  $region24: #{tpu_custom_call.1} parent=0 // pred_region
    _
  $region25: #{tpu_custom_call.1} parent=0 // pred_fallthru
    _
  // Predicated region
  $region26: #{tpu_custom_call.1} parent=0 // pred_check
    _
  $region27: #{tpu_custom_call.1} parent=0 // pred_check_branch
    %116 = sbr.rel (0) target = $region29
  $region28: #{tpu_custom_call.1} parent=0 // pred_region
    _
  $region29: #{tpu_custom_call.1} parent=0 // pred_fallthru
    _

</llo_original>
